<compile_context>
chip_gen: v5e
topology: v5e:2x2
jax: 0.10.0
libtpu: 0.0.40
codegen_flags: <defaults>
</compile_context>

<pallas_src>
import functools

import jax
import jax.numpy as jnp
from jax import lax
from jax.experimental import pallas as pl
from jax.experimental.pallas import tpu as pltpu


_MIB = 1024 * 1024


def _round_up(x, m):
    return ((x + m - 1) // m) * m


def _vmem_plan():
    """Return (tile budget bytes, vmem_limit_bytes), generation aware.

    v5e/v6e have 128 MiB physical VMEM -> large budget; v7x has 64 MiB per
    TensorCore -> smaller budget with headroom for compiler scratch.  If the
    hardware query fails, fall back to a conservative plan valid everywhere.
    """
    try:
        cap = int(pltpu.get_tpu_info().vmem_capacity_bytes)
    except Exception:
        return 32 * _MIB, 48 * _MIB            # unknown generation: safe everywhere
    if cap >= 96 * _MIB:                       # v5e / v6e (128 MiB)
        return 64 * _MIB, 100 * _MIB
    if cap >= 56 * _MIB:                       # v7x (64 MiB per TC)
        return 26 * _MIB, 40 * _MIB
    return 16 * _MIB, max(24 * _MIB, cap - 8 * _MIB)


def _pick_lm_head_tiles(M, V, H, h_bytes, w_bytes, out_bytes, budget):
    """MXU-aligned tiles whose double-buffered VMEM footprint stays <= budget.

    Keeps the full hidden (M, H) resident (constant block index -> fetched from HBM
    once) whenever it fits half the budget; otherwise falls back to 256-row tiles.
    The vocab tile tn is rounded to a multiple of 256 (256x256 MXU on v6e/v7x).
    """
    m_pad = _round_up(M, 8)
    if 2 * m_pad * H * h_bytes <= budget // 2:
        tm = M                                   # full residency: hidden DMA'd once
        hid_cost = 2 * m_pad * H * h_bytes
    else:
        tm = 256 if M > 256 else M
        hid_cost = 2 * _round_up(tm, 8) * H * h_bytes
    rows = _round_up(tm, 8)
    avail = max(budget - hid_cost, 0)
    # double-buffered weight tile + output tile (+ tiny per-column scale) per unit tn
    per_tn = 2 * (H * w_bytes + rows * out_bytes) + 4
    tn = 256
    if avail > per_tn * 256:
        tn = (avail // per_tn // 256) * 256
    tn = max(128, min(tn, 4096))
    if tn >= V:
        tn = V
    return tm, int(tn)


# ----------------------------------------------------------------------------
# Fused lm_head + greedy argmax kernel.
# ----------------------------------------------------------------------------
def _update_running_argmax(acc_f32, j, v_total, last_row, max_sc, idx_sc):
    """Lexicographic (value desc, index asc) running update over vocab tiles."""
    tn = acc_f32.shape[1]
    big = jnp.int32(2 ** 31 - 1)
    row = acc_f32[last_row:last_row + 1, :]                       # (1, tn) f32
    cols = lax.broadcasted_iota(jnp.int32, (1, tn), 1) + j * tn   # global vocab ids
    vals = jnp.where(cols < v_total, row, -jnp.inf)               # mask padded cols
    tile_max = jnp.max(vals, axis=1, keepdims=True)               # (1, 1)
    cand = jnp.where(vals == tile_max, cols, big)
    tile_arg = jnp.min(cand, axis=1, keepdims=True)               # first max in tile
    cur_max = max_sc[...]
    cur_idx = idx_sc[...]
    better = (tile_max > cur_max) | ((tile_max == cur_max) & (tile_arg < cur_idx))
    max_sc[...] = jnp.where(better, tile_max, cur_max)
    idx_sc[...] = jnp.where(better, tile_arg, cur_idx)


def _lm_head_argmax_kernel(h_ref, w_ref, o_ref, tok_ref, max_sc, idx_sc, *,
                           last_i, last_row, v_total):
    # h_ref : (tm, H), w_ref : (tn, H) -> o_ref : (tm, tn); tok_ref : (1, 1) int32.
    j = pl.program_id(0)      # vocab tile (outer)
    i = pl.program_id(1)      # row tile   (inner)

    @pl.when((j == 0) & (i == 0))
    def _():
        max_sc[...] = jnp.full(max_sc.shape, -jnp.inf, max_sc.dtype)
        idx_sc[...] = jnp.zeros(idx_sc.shape, idx_sc.dtype)

    acc = lax.dot_general(
        h_ref[...], w_ref[...],
        dimension_numbers=(((1,), (1,)), ((), ())),   # contract H on both sides
        preferred_element_type=jnp.float32)
    o_ref[...] = acc.astype(o_ref.dtype)

    @pl.when(i == last_i)
    def _():
        _update_running_argmax(acc, j, v_total, last_row, max_sc, idx_sc)

    @pl.when((j == pl.num_programs(0) - 1) & (i == pl.num_programs(1) - 1))
    def _():
        tok_ref[...] = idx_sc[...]


def _lm_head_argmax_int8_kernel(h_ref, w_ref, s_ref, o_ref, tok_ref, max_sc, idx_sc, *,
                                last_i, last_row, v_total):
    # int8 weight tile (tn, H) + per-column f32 scale (1, tn).
    j = pl.program_id(0)
    i = pl.program_id(1)

    @pl.when((j == 0) & (i == 0))
    def _():
        max_sc[...] = jnp.full(max_sc.shape, -jnp.inf, max_sc.dtype)
        idx_sc[...] = jnp.zeros(idx_sc.shape, idx_sc.dtype)

    w = w_ref[...].astype(jnp.bfloat16)            # exact for |q| <= 127
    acc = lax.dot_general(
        h_ref[...], w,
        dimension_numbers=(((1,), (1,)), ((), ())),
        preferred_element_type=jnp.float32)
    acc = acc * s_ref[...]                         # (tm, tn) * (1, tn) per-column scale
    o_ref[...] = acc.astype(o_ref.dtype)

    @pl.when(i == last_i)
    def _():
        _update_running_argmax(acc, j, v_total, last_row, max_sc, idx_sc)

    @pl.when((j == pl.num_programs(0) - 1) & (i == pl.num_programs(1) - 1))
    def _():
        tok_ref[...] = idx_sc[...]


def lm_head_argmax_pallas(hidden_mh, w_vh, w_scale=None, *,
                          out_dtype=jnp.bfloat16, tm=None, tn=None):
    """Fused lm_head projection + greedy argmax of the last row.

    hidden_mh: (M, H)           w_vh: (V, H) nn.Linear layout (NOT pre-transposed).
    w_scale  : None for bf16/f32 weights, or (1, V) f32 per-row scale for int8 weights.
    Returns (logits (M, V) out_dtype, token (1, 1) int32 = argmax of row M-1, exact
    first-occurrence semantics computed on the f32 accumulator).
    """
    M, H = hidden_mh.shape
    V, H2 = w_vh.shape
    assert H == H2, "hidden size mismatch with lm_head weight"

    quantized = w_scale is not None
    if quantized:
        assert w_vh.dtype == jnp.int8, "quantized path expects int8 weights"
        assert w_scale.shape == (1, V), "w_scale must be (1, V)"
        h = hidden_mh.astype(jnp.bfloat16)
        w_bytes = 1
    else:
        h = hidden_mh.astype(w_vh.dtype)           # stream activations in weight dtype
        w_bytes = jnp.dtype(w_vh.dtype).itemsize
    h_bytes = jnp.dtype(h.dtype).itemsize
    out_bytes = jnp.dtype(out_dtype).itemsize

    budget, vmem_limit = _vmem_plan()
    auto_tm, auto_tn = _pick_lm_head_tiles(M, V, H, h_bytes, w_bytes, out_bytes, budget)
    tm = auto_tm if tm is None else min(tm, M)
    tn = auto_tn if tn is None else min(tn, V)
    if tn != V and tn % 128 != 0:
        raise ValueError(f"tn={tn} must be a multiple of 128 or equal V={V}")
    if tm != M and tm % 8 != 0:
        raise ValueError(f"tm={tm} must be a multiple of 8 or equal M={M}")

    n_j = pl.cdiv(V, tn)          # vocab tiles (outer: weight tile fetched once)
    n_i = pl.cdiv(M, tm)          # row tiles   (inner)
    last_i = (M - 1) // tm        # row tile holding the last position
    last_row = (M - 1) % tm       # its local row index

    kernel_fn = _lm_head_argmax_int8_kernel if quantized else _lm_head_argmax_kernel
    kernel = functools.partial(kernel_fn, last_i=last_i, last_row=last_row, v_total=V)

    in_specs = [
        pl.BlockSpec((tm, H), lambda j, i: (i, 0)),   # hidden rows (resident if tm == M)
        pl.BlockSpec((tn, H), lambda j, i: (j, 0)),   # weight tile, native (V, H) layout
    ]
    args = [h, w_vh]
    if quantized:
        in_specs.append(pl.BlockSpec((1, tn), lambda j, i: (0, j)))
        args.append(w_scale.astype(jnp.float32))

    n_hidden_passes = 1 if tm == M else n_j
    cost = pl.CostEstimate(
        flops=2 * M * H * V,
        transcendentals=0,
        bytes_accessed=(V * H * w_bytes + n_hidden_passes * M * H * h_bytes
                        + M * V * out_bytes + (V * 4 if quantized else 0)),
    )

    # Both grid axes "arbitrary": the running (max, idx) scratch carries across the
    # vocab axis and the token output block is revisited on both axes.  (Measured
    # parallel-vs-arbitrary delta on v6e is ~0; decode is HBM-bound on v7x.)
    logits, token = pl.pallas_call(
        kernel,
        out_shape=(jax.ShapeDtypeStruct((M, V), out_dtype),
                   jax.ShapeDtypeStruct((1, 1), jnp.int32)),
        grid_spec=pltpu.PrefetchScalarGridSpec(
            num_scalar_prefetch=0,
            grid=(n_j, n_i),
            in_specs=in_specs,
            out_specs=(pl.BlockSpec((tm, tn), lambda j, i: (i, j)),
                       pl.BlockSpec((1, 1), lambda j, i: (0, 0))),
            scratch_shapes=[pltpu.VMEM((1, 1), jnp.float32),
                            pltpu.VMEM((1, 1), jnp.int32)]),
        compiler_params=pltpu.CompilerParams(
            dimension_semantics=("arbitrary", "arbitrary"),
            vmem_limit_bytes=vmem_limit),
        cost_estimate=cost,
    )(*args)
    return logits, token


def quantize_lm_head_int8(w_vh):
    """Per-output-row symmetric int8 quantization of the (V, H) lm_head weight.

    Run ONCE outside jit.  Returns (w_int8 (V, H), scale (1, V) f32); recommended for
    v5e/v6e where the decode lm_head is HBM-bandwidth bound.  (v7x: use fp8 instead.)
    """
    w = w_vh.astype(jnp.float32)
    absmax = jnp.max(jnp.abs(w), axis=1, keepdims=True)            # (V, 1)
    scale = jnp.maximum(absmax, 1e-12) / 127.0
    w_i8 = jnp.clip(jnp.round(w / scale), -127.0, 127.0).astype(jnp.int8)
    return w_i8, scale.reshape(1, -1)


# ----------------------------------------------------------------------------
# EeModel.forward (init=True, output_orig=True, greedy sampling) wrapper.
# ----------------------------------------------------------------------------
@jax.jit
def ee_model_forward(hidden_states, inputs_embeds, input_ids, lm_head_w, embed_table):
    """
    hidden_states : (B, S, H)       last hidden states of the base model
    inputs_embeds : (B, S, H)       hidden_states[0] of the base model
    input_ids     : (B, S)  int32
    lm_head_w     : (V, H)          nn.Linear layout; pass bf16 (cast once outside jit)
    embed_table   : (V, H)          ee_layer.embed_tokens weight

    Returns (orig_logits bf16, token, input_ids_new, inputs_embeds_new), mirroring the
    tensors EeModel.forward builds before calling topK_genrate.  The greedy token is
    exact (taken from the f32 accumulator inside the fused kernel).
    """
    B, S, H = hidden_states.shape
    V = lm_head_w.shape[0]
    assert B == 1, "flat argmax over orig[:, -1] matches torch semantics only for B == 1"

    # (1)+(2) fused: lm_head projection (bf16 logits writeback) + greedy argmax of the
    #          last position on the f32 accumulator.
    orig2d, token = lm_head_argmax_pallas(
        hidden_states.reshape(B * S, H), lm_head_w, out_dtype=jnp.bfloat16)
    orig = orig2d.reshape(B, S, V)

    # (3) append token to input_ids.
    input_ids_new = jnp.concatenate([input_ids, token.astype(input_ids.dtype)], axis=1)

    # (4) append its embedding to inputs_embeds.
    tok_emb = jnp.take(embed_table, token[0], axis=0)[None, ...]   # (1, 1, H)
    inputs_embeds_new = jnp.concatenate(
        [inputs_embeds, tok_emb.astype(inputs_embeds.dtype)], axis=1)

    # TODO(synk): ea_logits = ee_layer.topK_genrate(...) not reproduced.
    return orig, token, input_ids_new, inputs_embeds_new


if __name__ == "__main__":
    B, S, H, V = 1, 8, 128, 512   # batch must be 1 to match torch concat semantics

    key = jax.random.PRNGKey(0)
    k1, k2, k3, k4, k5, k6 = jax.random.split(key, 6)

    hidden_states = jax.random.normal(k1, (B, S, H), dtype=jnp.float32)
    inputs_embeds = jax.random.normal(k2, (B, S, H), dtype=jnp.float32)
    input_ids = jax.random.randint(k3, (B, S), 0, V, dtype=jnp.int32)
    lm_head_w = jax.random.normal(k4, (V, H), dtype=jnp.float32) * 0.05
    embed_table = jax.random.normal(k5, (V, H), dtype=jnp.float32) * 0.05

    # Stream the lm_head weight in bf16 (cast ONCE, outside jit — no per-call copy).
    lm_head_w_bf16 = lm_head_w.astype(jnp.bfloat16)

    orig, token, ids_new, emb_new = ee_model_forward(
        hidden_states, inputs_embeds, input_ids, lm_head_w_bf16, embed_table)
    jax.block_until_ready((orig, token, ids_new, emb_new))

    # Reference with the same bf16 operands / f32 accumulation.
    h2d_bf16 = hidden_states.reshape(B * S, H).astype(jnp.bfloat16)
    ref_logits = jnp.einsum("bsh,vh->bsv",
                            hidden_states.astype(jnp.bfloat16), lm_head_w_bf16,
                            preferred_element_type=jnp.float32)
    assert jnp.allclose(orig.astype(jnp.float32), ref_logits, atol=3e-2, rtol=3e-2), \
        "lm_head (bf16 writeback) mismatch"
    ref_token = jnp.argmax(ref_logits[:, -1].reshape(-1)).astype(jnp.int32)
    assert int(token[0, 0]) == int(ref_token), "fused argmax mismatch"
    assert ids_new.shape == (B, S + 1) and emb_new.shape == (B, S + 1, H)

    # Multi-block grid (forced small tiles), f32 logits writeback.
    o_s, t_s = lm_head_argmax_pallas(h2d_bf16, lm_head_w_bf16,
                                     out_dtype=jnp.float32, tm=8, tn=128)
    assert jnp.allclose(o_s.reshape(B, S, V), ref_logits, atol=2e-3, rtol=2e-3), \
        "tiled lm_head mismatch"
    assert int(t_s[0, 0]) == int(ref_token), "tiled fused argmax mismatch"

    # Partial last row tile (M not a multiple of tm).
    hid12 = jax.random.normal(k6, (12, H), dtype=jnp.float32).astype(jnp.bfloat16)
    ref12 = jnp.einsum("mh,vh->mv", hid12, lm_head_w_bf16,
                       preferred_element_type=jnp.float32)
    o12, t12 = lm_head_argmax_pallas(hid12, lm_head_w_bf16,
                                     out_dtype=jnp.float32, tm=8, tn=128)
    assert jnp.allclose(o12, ref12, atol=2e-3, rtol=2e-3), "partial-row-tile mismatch"
    assert int(t12[0, 0]) == int(jnp.argmax(ref12[-1])), "partial-row-tile argmax mismatch"

    # Partial last vocab tile (V not a multiple of tn) — exercises the column mask.
    V2 = 320
    w320 = lm_head_w_bf16[:V2]
    ref320 = jnp.einsum("mh,vh->mv", h2d_bf16, w320, preferred_element_type=jnp.float32)
    o320, t320 = lm_head_argmax_pallas(h2d_bf16, w320,
                                       out_dtype=jnp.float32, tm=8, tn=128)
    assert jnp.allclose(o320, ref320, atol=2e-3, rtol=2e-3), "partial-vocab-tile mismatch"
    assert int(t320[0, 0]) == int(jnp.argmax(ref320[-1])), "partial-vocab argmax mismatch"

    # int8 weight path (decode HBM-traffic halving on v5e/v6e).
    w_i8, w_scale = quantize_lm_head_int8(lm_head_w)
    deq = w_i8.astype(jnp.float32) * w_scale[0][:, None]
    ref_q = jnp.einsum("mh,vh->mv", h2d_bf16.astype(jnp.float32), deq,
                       preferred_element_type=jnp.float32)
    o_q, t_q = lm_head_argmax_pallas(h2d_bf16, w_i8, w_scale,
                                     out_dtype=jnp.float32, tm=8, tn=128)
    assert jnp.allclose(o_q, ref_q, atol=5e-3, rtol=5e-3), "int8 lm_head mismatch"
    assert int(t_q[0, 0]) == int(jnp.argmax(o_q[-1])), "int8 argmax self-consistency"
    assert int(t_q[0, 0]) == int(jnp.argmax(ref_q[-1])), "int8 argmax mismatch"
    # int8 path with auto tiles + bf16 writeback.
    o_q2, t_q2 = lm_head_argmax_pallas(h2d_bf16, w_i8, w_scale)
    assert jnp.allclose(o_q2.astype(jnp.float32), ref_q, atol=3e-2, rtol=3e-2), \
        "int8 (auto tiles) mismatch"
    assert int(t_q2[0, 0]) == int(jnp.argmax(ref_q[-1])), "int8 (auto tiles) argmax mismatch"

    print("KERNEL_OK")
</pallas_src>

<mosaic_0001>
module attributes {stable_mosaic.version = 11 : i64} {
  func.func @_lm_head_argmax_kernel(%arg0: i32, %arg1: i32, %arg2: memref<8x128xbf16, #tpu.memory_space<vmem>>, %arg3: memref<512x128xbf16, #tpu.memory_space<vmem>>, %arg4: memref<8x512xbf16, #tpu.memory_space<vmem>>, %arg5: memref<1x1xi32, #tpu.memory_space<vmem>>, %arg6: memref<1x1xf32, #tpu.memory_space<vmem>>, %arg7: memref<1x1xi32, #tpu.memory_space<vmem>>) attributes {dimension_semantics = [#tpu.dimension_semantics<arbitrary>, #tpu.dimension_semantics<arbitrary>], iteration_bounds = array<i64: 1, 1>, scalar_prefetch = 0 : i64, scratch_operands = 2 : i64, tpu.core_type = #tpu.core_type<tc>, window_params = [{transform_indices = @transform_0, window_bounds = array<i64: 8, 128>}, {transform_indices = @transform_1, window_bounds = array<i64: 512, 128>}, {transform_indices = @transform_2, window_bounds = array<i64: 8, 512>}, {pipeline_mode = #tpu.pipeline_mode<synchronous>, transform_indices = @transform_3, window_bounds = array<i64: 1, 1>}]} {
    %c0_i32 = arith.constant 0 : i32
    %0 = arith.cmpi eq, %arg0, %c0_i32 : i32
    %c0_i32_0 = arith.constant 0 : i32
    %1 = arith.cmpi eq, %arg1, %c0_i32_0 : i32
    %2 = arith.andi %0, %1 : i1
    %3 = arith.extui %2 : i1 to i32
    %c0_i32_1 = arith.constant 0 : i32
    %4 = arith.cmpi ne, %3, %c0_i32_1 : i32
    scf.if %4 {
      %cst_12 = arith.constant 0xFF800000 : f32
      %18 = vector.broadcast %cst_12 : f32 to vector<1x1xf32>
      %c0_13 = arith.constant 0 : index
      %c0_14 = arith.constant 0 : index
      %19 = vector.load %arg6[%c0_13, %c0_14] : memref<1x1xf32, #tpu.memory_space<vmem>>, vector<1x1xf32>
      tpu.vector_store %arg6[%c0_13, %c0_14], %18 {strides = array<i32>} : memref<1x1xf32, #tpu.memory_space<vmem>>, vector<1x1xf32>,
      %c0_i32_15 = arith.constant 0 : i32
      %20 = vector.broadcast %c0_i32_15 : i32 to vector<1x1xi32>
      %c0_16 = arith.constant 0 : index
      %c0_17 = arith.constant 0 : index
      %21 = vector.load %arg7[%c0_16, %c0_17] : memref<1x1xi32, #tpu.memory_space<vmem>>, vector<1x1xi32>
      tpu.vector_store %arg7[%c0_16, %c0_17], %20 {strides = array<i32>} : memref<1x1xi32, #tpu.memory_space<vmem>>, vector<1x1xi32>,
    } else {
    }
    %c0 = arith.constant 0 : index
    %c0_2 = arith.constant 0 : index
    %5 = vector.load %arg2[%c0, %c0_2] : memref<8x128xbf16, #tpu.memory_space<vmem>>, vector<8x128xbf16>
    %c0_3 = arith.constant 0 : index
    %c0_4 = arith.constant 0 : index
    %6 = vector.load %arg3[%c0_3, %c0_4] : memref<512x128xbf16, #tpu.memory_space<vmem>>, vector<512x128xbf16>
    %cst = arith.constant dense<0.000000e+00> : vector<8x512xf32>
    %7 = tpu.matmul %5, %6, %cst {dimension_numbers = #tpu.dot_dimension_numbers<[1], [1], [0], [0], [0, 0, 1, 0], [], []>} : vector<8x128xbf16>, vector<512x128xbf16>, vector<8x512xf32> -> vector<8x512xf32>
    %8 = arith.truncf %7 : vector<8x512xf32> to vector<8x512xbf16>
    %c0_5 = arith.constant 0 : index
    %c0_6 = arith.constant 0 : index
    %9 = vector.load %arg4[%c0_5, %c0_6] : memref<8x512xbf16, #tpu.memory_space<vmem>>, vector<8x512xbf16>
    tpu.vector_store %arg4[%c0_5, %c0_6], %8 {strides = array<i32>} : memref<8x512xbf16, #tpu.memory_space<vmem>>, vector<8x512xbf16>,
    %c0_i32_7 = arith.constant 0 : i32
    %10 = arith.cmpi eq, %arg1, %c0_i32_7 : i32
    %11 = arith.extui %10 : i1 to i32
    %c0_i32_8 = arith.constant 0 : i32
    %12 = arith.cmpi ne, %11, %c0_i32_8 : i32
    scf.if %12 {
      %18 = vector.extract_strided_slice %7 {offsets = [7, 0], sizes = [1, 512], strides = [1, 1]} : vector<8x512xf32> to vector<1x512xf32>
      %19 = tpu.iota {dimensions = array<i32: 1>} : vector<1x512xi32>
      %c512_i32 = arith.constant 512 : i32
      %20 = arith.muli %arg0, %c512_i32 : i32
      %21 = vector.broadcast %20 : i32 to vector<1x512xi32>
      %22 = arith.addi %19, %21 : vector<1x512xi32>
      %c512_i32_12 = arith.constant 512 : i32
      %23 = vector.broadcast %c512_i32_12 : i32 to vector<1x512xi32>
      %24 = arith.cmpi slt, %22, %23 : vector<1x512xi32>
      %cst_13 = arith.constant 0xFF800000 : f32
      %25 = vector.broadcast %cst_13 : f32 to vector<1x512xf32>
      %26 = arith.select %24, %18, %25 : vector<1x512xi1>, vector<1x512xf32>
      %cst_14 = arith.constant dense<0xFF800000> : vector<1xf32>
      %27 = vector.multi_reduction <maximumf>, %26, %cst_14 [1] : vector<1x512xf32> to vector<1xf32>
      %28 = vector.shape_cast %27 : vector<1xf32> to vector<1x1xf32>
      %29 = vector.broadcast %28 : vector<1x1xf32> to vector<1x512xf32>
      %30 = arith.cmpf oeq, %26, %29 : vector<1x512xf32>
      %c2147483647_i32 = arith.constant 2147483647 : i32
      %31 = vector.broadcast %c2147483647_i32 : i32 to vector<1x512xi32>
      %32 = arith.select %30, %22, %31 : vector<1x512xi1>, vector<1x512xi32>
      %cst_15 = arith.constant dense<2147483647> : vector<1xi32>
      %33 = vector.multi_reduction <minsi>, %32, %cst_15 [1] : vector<1x512xi32> to vector<1xi32>
      %34 = vector.shape_cast %33 : vector<1xi32> to vector<1x1xi32>
      %c0_16 = arith.constant 0 : index
      %c0_17 = arith.constant 0 : index
      %35 = vector.load %arg6[%c0_16, %c0_17] : memref<1x1xf32, #tpu.memory_space<vmem>>, vector<1x1xf32>
      %c0_18 = arith.constant 0 : index
      %c0_19 = arith.constant 0 : index
      %36 = vector.load %arg7[%c0_18, %c0_19] : memref<1x1xi32, #tpu.memory_space<vmem>>, vector<1x1xi32>
      %37 = arith.cmpf ogt, %28, %35 : vector<1x1xf32>
      %38 = arith.cmpf oeq, %28, %35 : vector<1x1xf32>
      %39 = arith.cmpi slt, %34, %36 : vector<1x1xi32>
      %40 = arith.andi %38, %39 : vector<1x1xi1>
      %41 = arith.ori %37, %40 : vector<1x1xi1>
      %42 = arith.select %41, %28, %35 : vector<1x1xi1>, vector<1x1xf32>
      %c0_20 = arith.constant 0 : index
      %c0_21 = arith.constant 0 : index
      %43 = vector.load %arg6[%c0_20, %c0_21] : memref<1x1xf32, #tpu.memory_space<vmem>>, vector<1x1xf32>
      tpu.vector_store %arg6[%c0_20, %c0_21], %42 {strides = array<i32>} : memref<1x1xf32, #tpu.memory_space<vmem>>, vector<1x1xf32>,
      %44 = arith.select %41, %34, %36 : vector<1x1xi1>, vector<1x1xi32>
      %c0_22 = arith.constant 0 : index
      %c0_23 = arith.constant 0 : index
      %45 = vector.load %arg7[%c0_22, %c0_23] : memref<1x1xi32, #tpu.memory_space<vmem>>, vector<1x1xi32>
      tpu.vector_store %arg7[%c0_22, %c0_23], %44 {strides = array<i32>} : memref<1x1xi32, #tpu.memory_space<vmem>>, vector<1x1xi32>,
    } else {
    }
    %c0_i32_9 = arith.constant 0 : i32
    %13 = arith.cmpi eq, %arg0, %c0_i32_9 : i32
    %c0_i32_10 = arith.constant 0 : i32
    %14 = arith.cmpi eq, %arg1, %c0_i32_10 : i32
    %15 = arith.andi %13, %14 : i1
    %16 = arith.extui %15 : i1 to i32
    %c0_i32_11 = arith.constant 0 : i32
    %17 = arith.cmpi ne, %16, %c0_i32_11 : i32
    scf.if %17 {
      %c0_12 = arith.constant 0 : index
      %c0_13 = arith.constant 0 : index
      %18 = vector.load %arg7[%c0_12, %c0_13] : memref<1x1xi32, #tpu.memory_space<vmem>>, vector<1x1xi32>
      %c0_14 = arith.constant 0 : index
      %c0_15 = arith.constant 0 : index
      %19 = vector.load %arg5[%c0_14, %c0_15] : memref<1x1xi32, #tpu.memory_space<vmem>>, vector<1x1xi32>
      tpu.vector_store %arg5[%c0_14, %c0_15], %18 {strides = array<i32>} : memref<1x1xi32, #tpu.memory_space<vmem>>, vector<1x1xi32>,
    } else {
    }
    return
  }
  func.func @transform_0(%arg0: i32, %arg1: i32) -> (i32, i32) {
    %c0_i32 = arith.constant 0 : i32
    %c0_i32_0 = arith.constant 0 : i32
    return %arg1, %c0_i32 : i32, i32
  }
  func.func @transform_1(%arg0: i32, %arg1: i32) -> (i32, i32) {
    %c0_i32 = arith.constant 0 : i32
    %c0_i32_0 = arith.constant 0 : i32
    return %arg0, %c0_i32 : i32, i32
  }
  func.func @transform_2(%arg0: i32, %arg1: i32) -> (i32, i32) {
    %c0_i32 = arith.constant 0 : i32
    return %arg1, %arg0 : i32, i32
  }
  func.func @transform_3(%arg0: i32, %arg1: i32) -> (i32, i32) {
    %c0_i32 = arith.constant 0 : i32
    %c0_i32_0 = arith.constant 0 : i32
    %c0_i32_1 = arith.constant 0 : i32
    return %c0_i32, %c0_i32_0 : i32, i32
  }
}

</mosaic_0001>

<llo_original>
// kernel: ee_model_forward.1
$region0: #{ee_model_forward.1}
  #allocation0 [shape = 'u32[]', space=smem, size = 0x4, offset = 0x4, fixed_abs, tag = 'smem constant byte address 0x4 - core index']
  #allocation1 [shape = 'u32[72,128]{1,0:T(1,128)}', space=vmem, size = 0x9000, scoped, tag = 'internal scratch']
  #allocation2 [shape = 'f32[1,1]{1,0:T(1,128)}', space=vmem, size = 0x200, scoped, tag = 'scratch operand']
  #allocation3 [shape = 's32[1,1]{1,0:T(1,128)}', space=vmem, size = 0x200, scoped, tag = 'scratch operand']
  %s0 = inlined_call_operand.vmem [shape: bf16[8,128], index: 0, kind: input, shape index: {}]
  %s1 = inlined_call_operand.hbm [shape: bf16[512,128], index: 1, kind: input, shape index: {}]
  %s2 = inlined_call_operand.hbm [shape: bf16[8,512], index: 2, kind: output, shape index: {0}]
  %s3 = inlined_call_operand.hbm [shape: s32[1,1], index: 3, kind: output, shape index: {1}]
  %4 = xla_tuple %s2, %s3
  %s5 = sld [smem:[#allocation0]]
  $region42: #{ee_model_forward.1} parent=0
    _
  %s7 = ssub.s32 1, %s5
  %s8 = scalar_select 0, %s7, %s5
  $region1: #{ee_model_forward.1} parent=0
    #allocation4 [shape = 'u8[131072]{0}', space=vmem, size = 0x20000, scoped, tag = 'input window, operand 1, single buffered']
    #allocation5 [shape = 's32[1]{0}', space=sflag, size = 0x4, scoped, tag = 'scoped memory for ee_model_forward.1']
    #allocation6 [shape = 's32[1]{0}', space=sflag, size = 0x4, scoped, tag = 'scoped memory for ee_model_forward.1']
    #allocation7 [shape = 'u8[8192]{0}', space=vmem, size = 0x2000, scoped, tag = 'output window, operand 0, single buffered']
    #allocation8 [shape = 'u8[512]{0}', space=vmem, size = 0x400, scoped, tag = 'output window, operand 1, single buffered']
    #allocation9 [shape = 's32[1]{0}', space=sflag, size = 0x4, scoped, tag = 'scoped memory for ee_model_forward.1']
    %9 = vsyncpa [#allocation5], 0
    %10 = vsyncpa [#allocation6], 0
    %11 = vsyncpa [#allocation9], 0
    // Predicated region
    $region2: #{ee_model_forward.1} parent=1 // pred_check
      _
    $region3: #{ee_model_forward.1} parent=1 // pred_check_branch
      %13 = sbr.rel (0) target = $region5
    $region4: #{ee_model_forward.1} parent=1 // pred_region
      _
    $region5: #{ee_model_forward.1} parent=1 // pred_fallthru
      _
    // Predicated region
    $region6: #{ee_model_forward.1} parent=1 // pred_check
      _
    $region7: #{ee_model_forward.1} parent=1 // pred_check_branch
      %15 = sbr.rel (0) target = $region9
    $region8: #{ee_model_forward.1} parent=1 // pred_region
      %17 = vsyncadd [#allocation5], 0
      %s18 = sshll.u32 %s1, 4
      %s19 = int_to_ptr.hbm [resolvable:$true] %s18
      %s20 = sshll.u32 [#allocation4], 4
      %s21 = int_to_ptr.vmem [resolvable:$true] %s20
      %26 = dma.hbm_to_vmem [thread:$0]  %s19, 4096, %s21, [#allocation5], 64, 64, 4
    $region9: #{ee_model_forward.1} parent=1 // pred_fallthru
      _
    // Predicated region
    $region10: #{ee_model_forward.1} parent=1 // pred_check
      _
    $region11: #{ee_model_forward.1} parent=1 // pred_check_branch
      %28 = sbr.rel (0) target = $region13
    $region12: #{ee_model_forward.1} parent=1 // pred_region
      %30 = dma.done [#allocation5], 4096
    $region13: #{ee_model_forward.1} parent=1 // pred_fallthru
      _
    %p31 = scmp.eq.s32.totalorder 0, 0
    %p32 = scmp.eq.s32.totalorder 0, 0
    %p33 = pnand %p31, %p32
    %p34 = pneg %p33
    // Predicated region
    $region14: #{ee_model_forward.1} parent=1 // pred_check
      _
    $region15: #{ee_model_forward.1} parent=1 // pred_check_branch
      %36 = sbr.rel (%p33) target = $region17
    $region16: #{ee_model_forward.1} parent=1 // pred_region
      %vm37 = vcmask 0
      %38 = vst.msk [vmem:[#allocation2] sm:$0x1] %vm37, -inf
      %39 = vst.msk [vmem:[#allocation3] sm:$0x1] %vm37, 0
    $region17: #{ee_model_forward.1} parent=1 // pred_fallthru
      _
    %v40 = vld [vmem:[%s0] sm:$0xf]
    %v41 = vld [vmem:[#allocation4] sm:$0xf]
    %v42 = vld [vmem:[#allocation4 + $0x4] sm:$0xf]
    %v43 = vld [vmem:[#allocation4 + $0x8] sm:$0xf]
    %v44 = vld [vmem:[#allocation4 + $0xc] sm:$0xf]
    %v45 = vld [vmem:[#allocation4 + $0x10] sm:$0xf]
    %v46 = vld [vmem:[#allocation4 + $0x14] sm:$0xf]
    %v47 = vld [vmem:[#allocation4 + $0x18] sm:$0xf]
    %v48 = vld [vmem:[#allocation4 + $0x1c] sm:$0xf]
    %v49 = vld [vmem:[#allocation4 + $0x20] sm:$0xf]
    %v50 = vld [vmem:[#allocation4 + $0x24] sm:$0xf]
    %v51 = vld [vmem:[#allocation4 + $0x28] sm:$0xf]
    %v52 = vld [vmem:[#allocation4 + $0x2c] sm:$0xf]
    %v53 = vld [vmem:[#allocation4 + $0x30] sm:$0xf]
    %v54 = vld [vmem:[#allocation4 + $0x34] sm:$0xf]
    %v55 = vld [vmem:[#allocation4 + $0x38] sm:$0xf]
    %v56 = vld [vmem:[#allocation4 + $0x3c] sm:$0xf]
    %v57 = vld [vmem:[#allocation4 + $0x40] sm:$0xf]
    %v58 = vld [vmem:[#allocation4 + $0x44] sm:$0xf]
    %v59 = vld [vmem:[#allocation4 + $0x48] sm:$0xf]
    %v60 = vld [vmem:[#allocation4 + $0x4c] sm:$0xf]
    %v61 = vld [vmem:[#allocation4 + $0x50] sm:$0xf]
    %v62 = vld [vmem:[#allocation4 + $0x54] sm:$0xf]
    %v63 = vld [vmem:[#allocation4 + $0x58] sm:$0xf]
    %v64 = vld [vmem:[#allocation4 + $0x5c] sm:$0xf]
    %v65 = vld [vmem:[#allocation4 + $0x60] sm:$0xf]
    %v66 = vld [vmem:[#allocation4 + $0x64] sm:$0xf]
    %v67 = vld [vmem:[#allocation4 + $0x68] sm:$0xf]
    %v68 = vld [vmem:[#allocation4 + $0x6c] sm:$0xf]
    %v69 = vld [vmem:[#allocation4 + $0x70] sm:$0xf]
    %v70 = vld [vmem:[#allocation4 + $0x74] sm:$0xf]
    %v71 = vld [vmem:[#allocation4 + $0x78] sm:$0xf]
    %v72 = vld [vmem:[#allocation4 + $0x7c] sm:$0xf]
    %v73 = vld [vmem:[#allocation4 + $0x80] sm:$0xf]
    %v74 = vld [vmem:[#allocation4 + $0x84] sm:$0xf]
    %v75 = vld [vmem:[#allocation4 + $0x88] sm:$0xf]
    %v76 = vld [vmem:[#allocation4 + $0x8c] sm:$0xf]
    %v77 = vld [vmem:[#allocation4 + $0x90] sm:$0xf]
    %v78 = vld [vmem:[#allocation4 + $0x94] sm:$0xf]
    %v79 = vld [vmem:[#allocation4 + $0x98] sm:$0xf]
    %v80 = vld [vmem:[#allocation4 + $0x9c] sm:$0xf]
    %v81 = vld [vmem:[#allocation4 + $0xa0] sm:$0xf]
    %v82 = vld [vmem:[#allocation4 + $0xa4] sm:$0xf]
    %v83 = vld [vmem:[#allocation4 + $0xa8] sm:$0xf]
    %v84 = vld [vmem:[#allocation4 + $0xac] sm:$0xf]
    %v85 = vld [vmem:[#allocation4 + $0xb0] sm:$0xf]
    %v86 = vld [vmem:[#allocation4 + $0xb4] sm:$0xf]
    %v87 = vld [vmem:[#allocation4 + $0xb8] sm:$0xf]
    %v88 = vld [vmem:[#allocation4 + $0xbc] sm:$0xf]
    %v89 = vld [vmem:[#allocation4 + $0xc0] sm:$0xf]
    %v90 = vld [vmem:[#allocation4 + $0xc4] sm:$0xf]
    %v91 = vld [vmem:[#allocation4 + $0xc8] sm:$0xf]
    %v92 = vld [vmem:[#allocation4 + $0xcc] sm:$0xf]
    %v93 = vld [vmem:[#allocation4 + $0xd0] sm:$0xf]
    %v94 = vld [vmem:[#allocation4 + $0xd4] sm:$0xf]
    %v95 = vld [vmem:[#allocation4 + $0xd8] sm:$0xf]
    %v96 = vld [vmem:[#allocation4 + $0xdc] sm:$0xf]
    %v97 = vld [vmem:[#allocation4 + $0xe0] sm:$0xf]
    %v98 = vld [vmem:[#allocation4 + $0xe4] sm:$0xf]
    %v99 = vld [vmem:[#allocation4 + $0xe8] sm:$0xf]
    %v100 = vld [vmem:[#allocation4 + $0xec] sm:$0xf]
    %v101 = vld [vmem:[#allocation4 + $0xf0] sm:$0xf]
    %v102 = vld [vmem:[#allocation4 + $0xf4] sm:$0xf]
    %v103 = vld [vmem:[#allocation4 + $0xf8] sm:$0xf]
    %v104 = vld [vmem:[#allocation4 + $0xfc] sm:$0xf]
    %v169 = vunpack.c.l.b16 %v41
    %v170 = vunpack.c.l.b16 %v42
    %v171 = vunpack.c.l.b16 %v43
    %v172 = vunpack.c.l.b16 %v44
    %v173 = vunpack.c.l.b16 %v45
    %v174 = vunpack.c.l.b16 %v46
    %v175 = vunpack.c.l.b16 %v47
    %v176 = vunpack.c.l.b16 %v48
    %v177 = vunpack.c.l.b16 %v49
    %v178 = vunpack.c.l.b16 %v50
    %v179 = vunpack.c.l.b16 %v51
    %v180 = vunpack.c.l.b16 %v52
    %v181 = vunpack.c.l.b16 %v53
    %v182 = vunpack.c.l.b16 %v54
    %v183 = vunpack.c.l.b16 %v55
    %v184 = vunpack.c.l.b16 %v56
    %v185 = vunpack.c.l.b16 %v57
    %v186 = vunpack.c.l.b16 %v58
    %v187 = vunpack.c.l.b16 %v59
    %v188 = vunpack.c.l.b16 %v60
    %v189 = vunpack.c.l.b16 %v61
    %v190 = vunpack.c.l.b16 %v62
    %v191 = vunpack.c.l.b16 %v63
    %v192 = vunpack.c.l.b16 %v64
    %v193 = vunpack.c.l.b16 %v65
    %v194 = vunpack.c.l.b16 %v66
    %v195 = vunpack.c.l.b16 %v67
    %v196 = vunpack.c.l.b16 %v68
    %v197 = vunpack.c.l.b16 %v69
    %v198 = vunpack.c.l.b16 %v70
    %v199 = vunpack.c.l.b16 %v71
    %v200 = vunpack.c.l.b16 %v72
    %v201 = vunpack.c.l.b16 %v73
    %v202 = vunpack.c.l.b16 %v74
    %v203 = vunpack.c.l.b16 %v75
    %v204 = vunpack.c.l.b16 %v76
    %v205 = vunpack.c.l.b16 %v77
    %v206 = vunpack.c.l.b16 %v78
    %v207 = vunpack.c.l.b16 %v79
    %v208 = vunpack.c.l.b16 %v80
    %v209 = vunpack.c.l.b16 %v81
    %v210 = vunpack.c.l.b16 %v82
    %v211 = vunpack.c.l.b16 %v83
    %v212 = vunpack.c.l.b16 %v84
    %v213 = vunpack.c.l.b16 %v85
    %v214 = vunpack.c.l.b16 %v86
    %v215 = vunpack.c.l.b16 %v87
    %v216 = vunpack.c.l.b16 %v88
    %v217 = vunpack.c.l.b16 %v89
    %v218 = vunpack.c.l.b16 %v90
    %v219 = vunpack.c.l.b16 %v91
    %v220 = vunpack.c.l.b16 %v92
    %v221 = vunpack.c.l.b16 %v93
    %v222 = vunpack.c.l.b16 %v94
    %v223 = vunpack.c.l.b16 %v95
    %v224 = vunpack.c.l.b16 %v96
    %v225 = vunpack.c.l.b16 %v97
    %v226 = vunpack.c.l.b16 %v98
    %v227 = vunpack.c.l.b16 %v99
    %v228 = vunpack.c.l.b16 %v100
    %v229 = vunpack.c.l.b16 %v101
    %v230 = vunpack.c.l.b16 %v102
    %v231 = vunpack.c.l.b16 %v103
    %v232 = vunpack.c.l.b16 %v104
    %v233 = vpack.c.b16 %v170, %v169
    %v234 = vpack.c.b16 %v172, %v171
    %v235 = vpack.c.b16 %v174, %v173
    %v236 = vpack.c.b16 %v176, %v175
    %v237 = vpack.c.b16 %v178, %v177
    %v238 = vpack.c.b16 %v180, %v179
    %v239 = vpack.c.b16 %v182, %v181
    %v240 = vpack.c.b16 %v184, %v183
    %v241 = vpack.c.b16 %v186, %v185
    %v242 = vpack.c.b16 %v188, %v187
    %v243 = vpack.c.b16 %v190, %v189
    %v244 = vpack.c.b16 %v192, %v191
    %v245 = vpack.c.b16 %v194, %v193
    %v246 = vpack.c.b16 %v196, %v195
    %v247 = vpack.c.b16 %v198, %v197
    %v248 = vpack.c.b16 %v200, %v199
    %v249 = vpack.c.b16 %v202, %v201
    %v250 = vpack.c.b16 %v204, %v203
    %v251 = vpack.c.b16 %v206, %v205
    %v252 = vpack.c.b16 %v208, %v207
    %v253 = vpack.c.b16 %v210, %v209
    %v254 = vpack.c.b16 %v212, %v211
    %v255 = vpack.c.b16 %v214, %v213
    %v256 = vpack.c.b16 %v216, %v215
    %v257 = vpack.c.b16 %v218, %v217
    %v258 = vpack.c.b16 %v220, %v219
    %v259 = vpack.c.b16 %v222, %v221
    %v260 = vpack.c.b16 %v224, %v223
    %v261 = vpack.c.b16 %v226, %v225
    %v262 = vpack.c.b16 %v228, %v227
    %v263 = vpack.c.b16 %v230, %v229
    %v264 = vpack.c.b16 %v232, %v231
    %297 = vmatpush.bf16.xpose.msra.mxu0 %v240
    %298 = vmatpush.bf16.xpose.msra.mxu0 %v239
    %299 = vmatpush.bf16.xpose.msra.mxu0 %v238
    %300 = vmatpush.bf16.xpose.msra.mxu0 %v237
    %301 = vmatpush.bf16.xpose.msra.mxu0 %v236
    %302 = vmatpush.bf16.xpose.msra.mxu0 %v235
    %303 = vmatpush.bf16.xpose.msra.mxu0 %v234
    %304 = vmatpush.bf16.xpose.msra.mxu0 %v233
    %305 = vmatmul.bf16.gmra.mxu0 %v40
    %v306 = vpop.f32.mrf.mxu0
    %v307 = vadd.f32 0.0, %v306
    %v308 = vpop.f32.mrf.mxu0
    %309 = vdwg.mxu0
    %310 = vmatpush.bf16.xpose.msra.mxu0 %v248
    %311 = vmatpush.bf16.xpose.msra.mxu0 %v247
    %312 = vmatpush.bf16.xpose.msra.mxu0 %v246
    %313 = vmatpush.bf16.xpose.msra.mxu0 %v245
    %314 = vmatpush.bf16.xpose.msra.mxu0 %v244
    %315 = vmatpush.bf16.xpose.msra.mxu0 %v243
    %316 = vmatpush.bf16.xpose.msra.mxu0 %v242
    %317 = vmatpush.bf16.xpose.msra.mxu0 %v241
    %318 = vmatmul.bf16.gmra.mxu0 %v40
    %v319 = vpop.f32.mrf.mxu0
    %v320 = vadd.f32 0.0, %v319
    %v321 = vpop.f32.mrf.mxu0
    %322 = vdwg.mxu0
    %323 = vmatpush.bf16.xpose.msra.mxu0 %v256
    %324 = vmatpush.bf16.xpose.msra.mxu0 %v255
    %325 = vmatpush.bf16.xpose.msra.mxu0 %v254
    %326 = vmatpush.bf16.xpose.msra.mxu0 %v253
    %327 = vmatpush.bf16.xpose.msra.mxu0 %v252
    %328 = vmatpush.bf16.xpose.msra.mxu0 %v251
    %329 = vmatpush.bf16.xpose.msra.mxu0 %v250
    %330 = vmatpush.bf16.xpose.msra.mxu0 %v249
    %331 = vmatmul.bf16.gmra.mxu0 %v40
    %v332 = vpop.f32.mrf.mxu0
    %v333 = vadd.f32 0.0, %v332
    %v334 = vpop.f32.mrf.mxu0
    %335 = vdwg.mxu0
    %336 = vmatpush.bf16.xpose.msra.mxu0 %v264
    %337 = vmatpush.bf16.xpose.msra.mxu0 %v263
    %338 = vmatpush.bf16.xpose.msra.mxu0 %v262
    %339 = vmatpush.bf16.xpose.msra.mxu0 %v261
    %340 = vmatpush.bf16.xpose.msra.mxu0 %v260
    %341 = vmatpush.bf16.xpose.msra.mxu0 %v259
    %342 = vmatpush.bf16.xpose.msra.mxu0 %v258
    %343 = vmatpush.bf16.xpose.msra.mxu0 %v257
    %344 = vmatmul.bf16.gmra.mxu0 %v40
    %v345 = vpop.f32.mrf.mxu0
    %v346 = vadd.f32 0.0, %v345
    %v347 = vpop.f32.mrf.mxu0
    %348 = vdwg.mxu0
    %v349 = vpack.c.bf16 %v320, %v307
    %v350 = vpack.c.bf16 %v346, %v333
    %351 = vst [vmem:[#allocation7] sm:$0xff] %v349
    %352 = vst [vmem:[#allocation7 + $0x8] sm:$0xff] %v350
    // Predicated region
    $region18: #{ee_model_forward.1} parent=1 // pred_check
      %p353 = pneg %p32
    $region19: #{ee_model_forward.1} parent=1 // pred_check_branch
      %355 = sbr.rel (%p353) target = $region21
    $region20: #{ee_model_forward.1} parent=1 // pred_region
      %v356 = vlaneseq
      %v357 = vand.u32 %v356, 127
      %v358 = vadd.s32 %v357, 128
      %v359 = vadd.s32 %v357, 256
      %v360 = vadd.s32 %v357, 384
      %s361 = smul.u32 0, 512
      %v362 = vstv %s361
      %v363 = vadd.s32 %v357, %v362
      %v364 = vadd.s32 %v358, %v362
      %v365 = vadd.s32 %v359, %v362
      %v366 = vadd.s32 %v360, %v362
      %vm367 = vcmp.lt.s32.totalorder %v363, 512
      %vm368 = vcmp.lt.s32.totalorder %v364, 512
      %vm369 = vcmp.lt.s32.totalorder %v365, 512
      %vm370 = vcmp.lt.s32.totalorder %v366, 512
      %v371 = vsel %vm367, %v307, -inf
      %v372 = vsel %vm368, %v320, -inf
      %v373 = vsel %vm369, %v333, -inf
      %v374 = vsel %vm370, %v346, -inf
      %vm375 = vcmask 1047559
      %v376 = vsel %vm375, %v371, -inf
      %v377 = vsel %vm375, %v372, -inf
      %v378 = vsel %vm375, %v373, -inf
      %v379 = vsel %vm375, %v374, -inf
      %v380 = vmax.f32 %v376, %v377
      %v381 = vmax.f32 %v378, %v379
      %v382 = vmax.f32 %v380, %v381
      %383 = vmax.xlane.f32.xlu0 %v382
      %v384 = vpop.xlane.xlu0 %383
      %vm385 = vcmp.eq.f32.partialorder %v371, %v384
      %vm386 = vcmp.eq.f32.partialorder %v372, %v384
      %vm387 = vcmp.eq.f32.partialorder %v373, %v384
      %vm388 = vcmp.eq.f32.partialorder %v374, %v384
      %v389 = vsel %vm385, %v363, 2147483647
      %v390 = vsel %vm386, %v364, 2147483647
      %v391 = vsel %vm387, %v365, 2147483647
      %v392 = vsel %vm388, %v366, 2147483647
      %v393 = vsel %vm375, %v389, 2147483647
      %v394 = vsel %vm375, %v390, 2147483647
      %v395 = vsel %vm375, %v391, 2147483647
      %v396 = vsel %vm375, %v392, 2147483647
      %vm397 = vcmp.lt.s32.totalorder %v393, %v394
      %v398 = vsel %vm397, %v393, %v394
      %vm399 = vcmp.lt.s32.totalorder %v395, %v396
      %v400 = vsel %vm399, %v395, %v396
      %vm401 = vcmp.lt.s32.totalorder %v398, %v400
      %v402 = vsel %vm401, %v398, %v400
      %v403 = vand.u32 %v402, 65535
      %v404 = vshra.s32 %v402, 16
      %v405 = vcvt.s32.f32 %v403
      %v406 = vcvt.s32.f32 %v404
      %407 = vmin.xlane.f32.xlu0 %v406
      %v408 = vpop.xlane.xlu0 %407
      %vm409 = vcmp.eq.f32.partialorder %v406, %v408
      %v410 = vsel %vm409, %v405, inf
      %411 = vmin.xlane.f32.xlu0 %v410
      %v412 = vpop.xlane.xlu0 %411
      %v413 = vcvt.f32.s32 %v412
      %v414 = vcvt.f32.s32 %v408
      %v415 = vshll.u32 %v414, 16
      %v416 = vadd.s32 %v415, %v413
      %v417 = vld [vmem:[#allocation2] sm:$0x1]
      %v418 = vld [vmem:[#allocation3] sm:$0x1]
      %v420 = vperm.slane %v417, 0
      %vm422 = vcmp.gt.f32.partialorder %v384, %v420
      %vm423 = vcmp.eq.f32.partialorder %v384, %v420
      %v424 = vperm.slane %v418, 0
      %vm425 = vcmp.lt.s32.totalorder %v416, %v424
      %vm426 = vmand %vm423, %vm425
      %vm427 = vmor %vm422, %vm426
      %v428 = vsel %vm427, %v384, %v420
      %vm429 = vcmask 7175
      %430 = vst.msk [vmem:[#allocation2 - $0x7] sm:$0x80] %vm429, %v428
      %v431 = vsel %vm427, %v416, %v424
      %432 = vst.msk [vmem:[#allocation3 - $0x7] sm:$0x80] %vm429, %v431
    $region21: #{ee_model_forward.1} parent=1 // pred_fallthru
      _
    // Predicated region
    $region22: #{ee_model_forward.1} parent=1 // pred_check
      _
    $region23: #{ee_model_forward.1} parent=1 // pred_check_branch
      %434 = sbr.rel (%p33) target = $region25
    $region24: #{ee_model_forward.1} parent=1 // pred_region
      %v435 = vld [vmem:[#allocation3] sm:$0x1]
      %vm436 = vcmask 0
      %437 = vst.msk [vmem:[#allocation8] sm:$0x1] %vm436, %v435
    $region25: #{ee_model_forward.1} parent=1 // pred_fallthru
      _
    // Predicated region
    $region26: #{ee_model_forward.1} parent=1 // pred_check
      _
    $region27: #{ee_model_forward.1} parent=1 // pred_check_branch
      %439 = sbr.rel (0) target = $region29
    $region28: #{ee_model_forward.1} parent=1 // pred_region
      %441 = vsyncadd [#allocation6], 0
      %s443 = sshll.u32 [#allocation7], 4
      %s444 = int_to_ptr.vmem [resolvable:$true] %s443
      %s445 = sshll.u32 %s2, 4
      %s446 = int_to_ptr.hbm [resolvable:$true] %s445
      %448 = dma.vmem_to_hbm [thread:$0]  %s444, 256, %s446, [#allocation6]
    $region29: #{ee_model_forward.1} parent=1 // pred_fallthru
      _
    // Predicated region
    $region30: #{ee_model_forward.1} parent=1 // pred_check
      _
    $region31: #{ee_model_forward.1} parent=1 // pred_check_branch
      %450 = sbr.rel (0) target = $region33
    $region32: #{ee_model_forward.1} parent=1 // pred_region
      %452 = vsyncadd [#allocation9], 0
      %s454 = sshll.u32 [#allocation8], 4
      %s455 = int_to_ptr.vmem [resolvable:$true] %s454
      %s456 = sshll.u32 %s3, 4
      %s457 = int_to_ptr.hbm [resolvable:$true] %s456
      %459 = dma.vmem_to_hbm [thread:$0]  %s455, 16, %s457, [#allocation9]
    $region33: #{ee_model_forward.1} parent=1 // pred_fallthru
      _
    // Predicated region
    $region34: #{ee_model_forward.1} parent=1 // pred_check
      _
    $region35: #{ee_model_forward.1} parent=1 // pred_check_branch
      %461 = sbr.rel (0) target = $region37
    $region36: #{ee_model_forward.1} parent=1 // pred_region
      %463 = dma.done [#allocation6], 256
    $region37: #{ee_model_forward.1} parent=1 // pred_fallthru
      _
    // Predicated region
    $region38: #{ee_model_forward.1} parent=1 // pred_check
      _
    $region39: #{ee_model_forward.1} parent=1 // pred_check_branch
      %465 = sbr.rel (0) target = $region41
    $region40: #{ee_model_forward.1} parent=1 // pred_region
      %467 = dma.done [#allocation9], 16
    $region41: #{ee_model_forward.1} parent=1 // pred_fallthru
      _
    %468 = vsyncpa [#allocation5], 1
    %469 = vsyncpa [#allocation6], 1
    %470 = vsyncpa [#allocation9], 1

</llo_original>
